<compile_context>
chip_gen: v7x
topology: tpu7x:2x2x1
jax: 0.10.0
libtpu: 0.0.40
codegen_flags: <defaults>
</compile_context>

<pallas_src>
import functools

import jax
import jax.numpy as jnp
from jax import lax
from jax.experimental import pallas as pl
from jax.experimental.pallas import tpu as pltpu


def _round_up(a, b):
    return ((a + b - 1) // b) * b


def channel_gate_kernel(x_ref, w1t_ref, b1_ref, w2t_ref, b2_ref, o_ref, acc_ref,
                        *, inv_hw, lane_chunks, last_full_chunks, tail_len,
                        chunk_unroll):
    # x_ref:   (1, C, hw_tile)   streamed block of one batch row
    # w1t_ref: (C, Cr)           conv1 weight, pre-transposed in the wrapper
    # b1_ref:  (1, Cr)
    # w2t_ref: (Cr, C)           conv2 weight, pre-transposed in the wrapper
    # b2_ref:  (1, C)
    # o_ref:   (1, 1, C)         gate output for this batch row
    # acc_ref: (1, C, 128) f32   partial-sum accumulator (VMEM scratch)
    k = pl.program_id(1)
    last = pl.num_programs(1) - 1

    @pl.when(k == 0)
    def _init():
        acc_ref[...] = jnp.zeros_like(acc_ref)

    def accumulate(n_chunks):
        # Per-chunk loads (never materialize the whole tile in vregs); the
        # carry keeps the accumulator in registers across the loop.
        def body(j, acc):
            start = pl.multiple_of(j * 128, 128)
            return acc + x_ref[:, :, pl.ds(start, 128)].astype(jnp.float32)

        if n_chunks <= 0:
            return acc_ref[...]
        return lax.fori_loop(0, n_chunks, body, acc_ref[...],
                             unroll=min(chunk_unroll, n_chunks))

    needs_tail = (last_full_chunks != lane_chunks) or (tail_len > 0)

    if not needs_tail:
        # Every block is full: one uniform steady-state path.
        acc_ref[...] = accumulate(lane_chunks)
    else:
        @pl.when(k != last)
        def _steady():
            acc_ref[...] = accumulate(lane_chunks)

        @pl.when(k == last)
        def _last():
            acc = accumulate(last_full_chunks)
            if tail_len > 0:
                start = last_full_chunks * 128
                chunk = x_ref[:, :, pl.ds(start, 128)].astype(jnp.float32)
                lane = lax.broadcasted_iota(jnp.int32, chunk.shape, dimension=2)
                acc = acc + jnp.where(lane < tail_len, chunk, 0.0)
            acc_ref[...] = acc

    # Epilogue: one cross-lane reduce + the tiny MLP, exactly once per batch
    # row (kept off the steady-state, HBM-bound path).
    @pl.when(k == last)
    def _finish():
        pooled = jnp.sum(acc_ref[...], axis=-1) * inv_hw       # (1, C) global mean
        h = jnp.dot(pooled, w1t_ref[...],
                    preferred_element_type=jnp.float32) + b1_ref[...]
        h = jnp.maximum(h, 0.0)                                  # relu(conv1)
        y = jnp.dot(h, w2t_ref[...],
                    preferred_element_type=jnp.float32) + b2_ref[...]
        o_ref[0] = jax.nn.sigmoid(y)                             # sigmoid(conv2)


def channel_gate(x, w1, b1, w2, b2):
    """x: (N, C, H, W); conv weights in PyTorch 1x1 layout. Returns (N, C, 1, 1) f32."""
    N, C, H, W = x.shape
    Cr = w1.shape[0]
    HW = H * W

    x3 = x.reshape(N, C, HW)                      # glue reshape, no copy / no pad

    # HW tile: multiple of 128 lanes, sized to ~6 MiB of input per block
    # (double-buffered this fits v5e with an explicit vmem limit and is far
    # below v7x's 64 MiB physical VMEM).
    itemsize = jnp.dtype(x3.dtype).itemsize
    block_budget = 6 * 1024 * 1024
    max_tile_by_vmem = max(128, (block_budget // (C * itemsize)) // 128 * 128)
    hw_tile = int(min(max_tile_by_vmem, _round_up(HW, 128)))
    n_hw = pl.cdiv(HW, hw_tile)

    lane_chunks = hw_tile // 128
    rem = HW - (n_hw - 1) * hw_tile               # valid elements in the last block
    last_full_chunks = rem // 128
    tail_len = rem % 128

    block_bytes = C * hw_tile * itemsize
    vmem_limit = int(min(48 << 20, max(2 * block_bytes + (4 << 20), 16 << 20)))

    # Pre-transpose the 1x1 conv weights once in XLA (no in-kernel transpose).
    w1t = w1.reshape(Cr, C).T.astype(jnp.float32)  # (C, Cr)
    w2t = w2.reshape(C, Cr).T.astype(jnp.float32)  # (Cr, C)
    b1r = b1.reshape(1, Cr).astype(jnp.float32)
    b2r = b2.reshape(1, C).astype(jnp.float32)

    kernel = functools.partial(
        channel_gate_kernel,
        inv_hw=1.0 / float(HW),
        lane_chunks=lane_chunks,
        last_full_chunks=last_full_chunks,
        tail_len=tail_len,
        chunk_unroll=4,
    )

    out = pl.pallas_call(
        kernel,
        out_shape=jax.ShapeDtypeStruct((N, 1, C), jnp.float32),
        grid_spec=pltpu.PrefetchScalarGridSpec(
            num_scalar_prefetch=0,
            grid=(N, n_hw),                       # HW reduction axis last
            in_specs=[
                pl.BlockSpec((1, C, hw_tile), lambda i, k: (i, 0, k)),
                pl.BlockSpec((C, Cr), lambda i, k: (0, 0)),
                pl.BlockSpec((1, Cr), lambda i, k: (0, 0)),
                pl.BlockSpec((Cr, C), lambda i, k: (0, 0)),
                pl.BlockSpec((1, C), lambda i, k: (0, 0)),
            ],
            out_specs=pl.BlockSpec((1, 1, C), lambda i, k: (i, 0, 0)),
            scratch_shapes=[pltpu.VMEM((1, C, 128), jnp.float32)],
        ),
        compiler_params=pltpu.CompilerParams(
            dimension_semantics=("parallel", "arbitrary"),
            vmem_limit_bytes=vmem_limit),
    )(x3, w1t, b1r, w2t, b2r)

    return out.reshape(N, C, 1, 1)


def reference(x, w1, b1, w2, b2):
    """Pure-JAX reference matching the PyTorch forward."""
    N, C, H, W = x.shape
    Cr = w1.shape[0]
    pooled = jnp.mean(x, axis=(2, 3))             # (N, C)
    h = jnp.maximum(pooled @ w1.reshape(Cr, C).T + b1, 0.0)
    y = jax.nn.sigmoid(h @ w2.reshape(C, Cr).T + b2)
    return y.reshape(N, C, 1, 1)


if __name__ == "__main__":
    # Small shapes consistent with the module: out_channels must be >= 16.
    N, C, H, W = 2, 64, 16, 16
    Cr = C // 16

    key = jax.random.PRNGKey(0)
    kx, kw1, kb1, kw2, kb2 = jax.random.split(key, 5)

    x = jax.random.normal(kx, (N, C, H, W), dtype=jnp.float32)
    # Deterministic synthetic parameters (same shapes as nn.Conv2d 1x1 layers).
    w1 = jax.random.normal(kw1, (Cr, C, 1, 1), dtype=jnp.float32) * 0.1
    b1 = jax.random.normal(kb1, (Cr,), dtype=jnp.float32) * 0.1
    w2 = jax.random.normal(kw2, (C, Cr, 1, 1), dtype=jnp.float32) * 0.1
    b2 = jax.random.normal(kb2, (C,), dtype=jnp.float32) * 0.1

    out = jax.block_until_ready(channel_gate(x, w1, b1, w2, b2))

    ref = reference(x, w1, b1, w2, b2)
    assert out.shape == (N, C, 1, 1), out.shape
    assert jnp.allclose(out, ref, atol=1e-5, rtol=1e-5), float(
        jnp.max(jnp.abs(out - ref)))

    # Also exercise the in-kernel tail-masking path (HW not a multiple of the
    # 128-lane chunk) to make sure no padded/garbage lanes leak into the mean.
    x2 = jax.random.normal(kx, (N, C, 15, 15), dtype=jnp.float32)
    out2 = jax.block_until_ready(channel_gate(x2, w1, b1, w2, b2))
    ref2 = reference(x2, w1, b1, w2, b2)
    assert jnp.allclose(out2, ref2, atol=1e-5, rtol=1e-5), float(
        jnp.max(jnp.abs(out2 - ref2)))

    print("KERNEL_OK")
</pallas_src>

<mosaic_0001>
module attributes {stable_mosaic.version = 11 : i64} {
  func.func @channel_gate_kernel(%arg0: i32, %arg1: i32, %arg2: memref<1x64x256xf32, #tpu.memory_space<vmem>>, %arg3: memref<64x4xf32, #tpu.memory_space<vmem>>, %arg4: memref<1x4xf32, #tpu.memory_space<vmem>>, %arg5: memref<4x64xf32, #tpu.memory_space<vmem>>, %arg6: memref<1x64xf32, #tpu.memory_space<vmem>>, %arg7: memref<1x1x64xf32, #tpu.memory_space<vmem>>, %arg8: memref<1x64x128xf32, #tpu.memory_space<vmem>>) attributes {dimension_semantics = [#tpu.dimension_semantics<parallel>, #tpu.dimension_semantics<arbitrary>], iteration_bounds = array<i64: 2, 1>, scalar_prefetch = 0 : i64, scratch_operands = 1 : i64, tpu.core_type = #tpu.core_type<tc>, window_params = [{transform_indices = @transform_0, window_bounds = array<i64: 1, 64, 256>}, {pipeline_mode = #tpu.pipeline_mode<synchronous>, transform_indices = @transform_1, window_bounds = array<i64: 64, 4>}, {pipeline_mode = #tpu.pipeline_mode<synchronous>, transform_indices = @transform_2, window_bounds = array<i64: 1, 4>}, {pipeline_mode = #tpu.pipeline_mode<synchronous>, transform_indices = @transform_3, window_bounds = array<i64: 4, 64>}, {pipeline_mode = #tpu.pipeline_mode<synchronous>, transform_indices = @transform_4, window_bounds = array<i64: 1, 64>}, {transform_indices = @transform_5, window_bounds = array<i64: 1, 1, 64>}]} {
    %c0_i32 = arith.constant 0 : i32
    %0 = arith.cmpi eq, %arg1, %c0_i32 : i32
    %1 = arith.extui %0 : i1 to i32
    %c0_i32_0 = arith.constant 0 : i32
    %2 = arith.cmpi ne, %1, %c0_i32_0 : i32
    scf.if %2 {
      %cst = arith.constant 0.000000e+00 : f32
      %18 = vector.broadcast %cst : f32 to vector<1x64x128xf32>
      %c0_14 = arith.constant 0 : index
      %c0_15 = arith.constant 0 : index
      %c0_16 = arith.constant 0 : index
      %19 = vector.load %arg8[%c0_14, %c0_15, %c0_16] : memref<1x64x128xf32, #tpu.memory_space<vmem>>, vector<1x64x128xf32>
      tpu.vector_store %arg8[%c0_14, %c0_15, %c0_16], %18 {strides = array<i32>} : memref<1x64x128xf32, #tpu.memory_space<vmem>>, vector<1x64x128xf32>,
    } else {
    }
    %c0 = arith.constant 0 : index
    %c0_1 = arith.constant 0 : index
    %c0_2 = arith.constant 0 : index
    %3 = vector.load %arg8[%c0, %c0_1, %c0_2] : memref<1x64x128xf32, #tpu.memory_space<vmem>>, vector<1x64x128xf32>
    %c0_i32_3 = arith.constant 0 : i32
    %c128_i32 = arith.constant 128 : i32
    %4 = arith.muli %c0_i32_3, %c128_i32 : i32
    %5 = tpu.assume_multiple %4, 128 : i32
    %c0_4 = arith.constant 0 : index
    %c0_5 = arith.constant 0 : index
    %6 = arith.index_cast %5 : i32 to index
    %7 = vector.load %arg2[%c0_4, %c0_5, %6] : memref<1x64x256xf32, #tpu.memory_space<vmem>>, vector<1x64x128xf32>
    %8 = arith.addf %3, %7 : vector<1x64x128xf32>
    %c1_i32 = arith.constant 1 : i32
    %c128_i32_6 = arith.constant 128 : i32
    %9 = arith.muli %c1_i32, %c128_i32_6 : i32
    %10 = tpu.assume_multiple %9, 128 : i32
    %c0_7 = arith.constant 0 : index
    %c0_8 = arith.constant 0 : index
    %11 = arith.index_cast %10 : i32 to index
    %12 = vector.load %arg2[%c0_7, %c0_8, %11] : memref<1x64x256xf32, #tpu.memory_space<vmem>>, vector<1x64x128xf32>
    %13 = arith.addf %8, %12 : vector<1x64x128xf32>
    %c2_i32 = arith.constant 2 : i32
    %c0_9 = arith.constant 0 : index
    %c0_10 = arith.constant 0 : index
    %c0_11 = arith.constant 0 : index
    %14 = vector.load %arg8[%c0_9, %c0_10, %c0_11] : memref<1x64x128xf32, #tpu.memory_space<vmem>>, vector<1x64x128xf32>
    tpu.vector_store %arg8[%c0_9, %c0_10, %c0_11], %13 {strides = array<i32>} : memref<1x64x128xf32, #tpu.memory_space<vmem>>, vector<1x64x128xf32>,
    %c0_i32_12 = arith.constant 0 : i32
    %15 = arith.cmpi eq, %arg1, %c0_i32_12 : i32
    %16 = arith.extui %15 : i1 to i32
    %c0_i32_13 = arith.constant 0 : i32
    %17 = arith.cmpi ne, %16, %c0_i32_13 : i32
    scf.if %17 {
      %c0_14 = arith.constant 0 : index
      %c0_15 = arith.constant 0 : index
      %c0_16 = arith.constant 0 : index
      %18 = vector.load %arg8[%c0_14, %c0_15, %c0_16] : memref<1x64x128xf32, #tpu.memory_space<vmem>>, vector<1x64x128xf32>
      %cst = arith.constant dense<0.000000e+00> : vector<1x64xf32>
      %19 = vector.multi_reduction <add>, %18, %cst [2] : vector<1x64x128xf32> to vector<1x64xf32>
      %cst_17 = arith.constant 3.906250e-03 : f32
      %20 = vector.broadcast %cst_17 : f32 to vector<1x64xf32>
      %21 = arith.mulf %19, %20 : vector<1x64xf32>
      %c0_18 = arith.constant 0 : index
      %c0_19 = arith.constant 0 : index
      %22 = vector.load %arg3[%c0_18, %c0_19] : memref<64x4xf32, #tpu.memory_space<vmem>>, vector<64x4xf32>
      %cst_20 = arith.constant dense<0.000000e+00> : vector<1x4xf32>
      %23 = tpu.matmul %21, %22, %cst_20 {dimension_numbers = #tpu.dot_dimension_numbers<[1], [0], [0], [1], [0, 0, 1, 1], [], []>} : vector<1x64xf32>, vector<64x4xf32>, vector<1x4xf32> -> vector<1x4xf32>
      %c0_21 = arith.constant 0 : index
      %c0_22 = arith.constant 0 : index
      %24 = vector.load %arg4[%c0_21, %c0_22] : memref<1x4xf32, #tpu.memory_space<vmem>>, vector<1x4xf32>
      %25 = arith.addf %23, %24 : vector<1x4xf32>
      %cst_23 = arith.constant 0.000000e+00 : f32
      %26 = vector.broadcast %cst_23 : f32 to vector<1x4xf32>
      %27 = arith.maximumf %25, %26 : vector<1x4xf32>
      %c0_24 = arith.constant 0 : index
      %c0_25 = arith.constant 0 : index
      %28 = vector.load %arg5[%c0_24, %c0_25] : memref<4x64xf32, #tpu.memory_space<vmem>>, vector<4x64xf32>
      %cst_26 = arith.constant dense<0.000000e+00> : vector<1x64xf32>
      %29 = tpu.matmul %27, %28, %cst_26 {dimension_numbers = #tpu.dot_dimension_numbers<[1], [0], [0], [1], [0, 0, 1, 1], [], []>} : vector<1x4xf32>, vector<4x64xf32>, vector<1x64xf32> -> vector<1x64xf32>
      %c0_27 = arith.constant 0 : index
      %c0_28 = arith.constant 0 : index
      %30 = vector.load %arg6[%c0_27, %c0_28] : memref<1x64xf32, #tpu.memory_space<vmem>>, vector<1x64xf32>
      %31 = arith.addf %29, %30 : vector<1x64xf32>
      %32 = arith.negf %31 : vector<1x64xf32>
      %33 = math.exp %32 : vector<1x64xf32>
      %cst_29 = arith.constant 1.000000e+00 : f32
      %34 = vector.broadcast %cst_29 : f32 to vector<1x64xf32>
      %35 = arith.addf %34, %33 : vector<1x64xf32>
      %36 = arith.divf %34, %35 : vector<1x64xf32>
      %c0_30 = arith.constant 0 : index
      %c0_31 = arith.constant 0 : index
      %c0_32 = arith.constant 0 : index
      %37 = vector.load %arg7[%c0_30, %c0_31, %c0_32] : memref<1x1x64xf32, #tpu.memory_space<vmem>>, vector<1x1x64xf32>
      %38 = vector.shape_cast %37 : vector<1x1x64xf32> to vector<1x64xf32>
      %39 = vector.shape_cast %36 : vector<1x64xf32> to vector<1x1x64xf32>
      tpu.vector_store %arg7[%c0_30, %c0_31, %c0_32], %39 {strides = array<i32>} : memref<1x1x64xf32, #tpu.memory_space<vmem>>, vector<1x1x64xf32>,
    } else {
    }
    return
  }
  func.func @transform_0(%arg0: i32, %arg1: i32) -> (i32, i32, i32) {
    %c0_i32 = arith.constant 0 : i32
    %c0_i32_0 = arith.constant 0 : i32
    return %arg0, %c0_i32, %arg1 : i32, i32, i32
  }
  func.func @transform_1(%arg0: i32, %arg1: i32) -> (i32, i32) {
    %c0_i32 = arith.constant 0 : i32
    %c0_i32_0 = arith.constant 0 : i32
    %c0_i32_1 = arith.constant 0 : i32
    return %c0_i32, %c0_i32_0 : i32, i32
  }
  func.func @transform_2(%arg0: i32, %arg1: i32) -> (i32, i32) {
    %c0_i32 = arith.constant 0 : i32
    %c0_i32_0 = arith.constant 0 : i32
    %c0_i32_1 = arith.constant 0 : i32
    return %c0_i32, %c0_i32_0 : i32, i32
  }
  func.func @transform_3(%arg0: i32, %arg1: i32) -> (i32, i32) {
    %c0_i32 = arith.constant 0 : i32
    %c0_i32_0 = arith.constant 0 : i32
    %c0_i32_1 = arith.constant 0 : i32
    return %c0_i32, %c0_i32_0 : i32, i32
  }
  func.func @transform_4(%arg0: i32, %arg1: i32) -> (i32, i32) {
    %c0_i32 = arith.constant 0 : i32
    %c0_i32_0 = arith.constant 0 : i32
    %c0_i32_1 = arith.constant 0 : i32
    return %c0_i32, %c0_i32_0 : i32, i32
  }
  func.func @transform_5(%arg0: i32, %arg1: i32) -> (i32, i32, i32) {
    %c0_i32 = arith.constant 0 : i32
    %c0_i32_0 = arith.constant 0 : i32
    %c0_i32_1 = arith.constant 0 : i32
    return %arg0, %c0_i32, %c0_i32_0 : i32, i32, i32
  }
}

</mosaic_0001>

<llo_original>
// kernel: tpu_custom_call.1
$region0: #{tpu_custom_call.1}
  #allocation0 [shape = 'u32[]', space=smem, size = 0x4, offset = 0x4, fixed_abs, tag = 'smem constant byte address 0x4 - core index']
  #allocation1 [shape = 'u32[144,128]{1,0:T(1,128)}', space=vmem, size = 0x12000, scoped, tag = 'internal scratch']
  #allocation2 [shape = 'f32[1,64,128]{2,1,0:T(8,128)}', space=vmem, size = 0x8000, scoped, tag = 'scratch operand']
  %s0 = inlined_call_operand.hbm [shape: f32[2,64,256], index: 0, kind: input, shape index: {}]
  %s1 = inlined_call_operand.vmem [shape: f32[64,4], index: 1, kind: input, shape index: {}]
  %s2 = inlined_call_operand.vmem [shape: f32[1,4], index: 2, kind: input, shape index: {}]
  %s3 = inlined_call_operand.vmem [shape: f32[4,64], index: 3, kind: input, shape index: {}]
  %s4 = inlined_call_operand.vmem [shape: f32[1,64], index: 4, kind: input, shape index: {}]
  %s5 = inlined_call_operand.hbm [shape: f32[2,1,64], index: 5, kind: output, shape index: {}]
  %s6 = sld [smem:[#allocation0]]
  $region65: #{tpu_custom_call.1} parent=0
    _
  %s8 = ssub.s32 1, %s6
  %s9 = scalar_select 0, %s8, %s6
  $region1: #{tpu_custom_call.1} parent=0
    #allocation3 [shape = 'u8[131072]{0}', space=vmem, size = 0x20000, scoped, tag = 'input window, operand 0']
    #allocation4 [shape = 's32[2]{0}', space=sflag, size = 0x8, scoped, tag = 'scoped memory for tpu_custom_call.1']
    #allocation5 [shape = 's32[2]{0}', space=sflag, size = 0x8, scoped, tag = 'scoped memory for tpu_custom_call.1']
    #allocation6 [shape = 'u8[1024]{0}', space=vmem, size = 0x400, scoped, tag = 'output window, operand 0']
    %10 = vsyncpa [#allocation4], 0
    %s11 = scalar_lea.sflag [#allocation4], 1
    %12 = vsyncpa %s11, 0
    %13 = vsyncpa [#allocation5], 0
    %s14 = scalar_lea.sflag [#allocation5], 1
    %15 = vsyncpa %s14, 0
    loop: start=0, step=1, limit=4
    $region2: #{tpu_custom_call.1} parent=1 // loop_pre_header
      _
    $region3: #{tpu_custom_call.1} parent=1 // loop_header
      %s17 = sphi 0, %s21
      %p18 = scmp.ge.s32.totalorder %s17, 4
      %s24 = sphi 0, %s36
      %s25 = sphi 0, %s32
      %s26 = sphi 0, %s24
      %s27 = sphi 0, %s25
      %s28 = sphi 0, %s26
      %s29 = sphi 0, %s27
      %s41 = sphi 0, %s43
      %s44 = sphi 0, %s41
      %s45 = sphi 0, %s44
      %s61 = sphi 0, %s45
      %s65 = sphi 0, %s65
      %s67 = sphi 0, %s65
      %s68 = sphi 0, %s67
      %s82 = sphi 0, %s68
      %s86 = sphi 0, %s86
      %s88 = sphi 0, %s86
      %s89 = sphi 0, %s88
      %s103 = sphi 0, %s89
      %s107 = sphi 0, %s107
      %s109 = sphi 0, %s107
      %s110 = sphi 0, %s109
      %s124 = sphi 0, %s110
      %s128 = sphi 0, %s128
      %s130 = sphi 0, %s128
      %s131 = sphi 0, %s130
      %s145 = sphi 0, %s131
      %s151 = sphi 0, %s153
      %s154 = sphi 0, %s151
      %s155 = sphi 0, %s154
      %s171 = sphi 0, %s155
    $region4: #{tpu_custom_call.1} parent=1 // loop_header_branch
      %20 = sbr.rel (%p18) target = $region8
    $region5: #{tpu_custom_call.1} parent=1 // loop_body
      %s22 = ssub.s32 %s17, 1
      %s23 = ssub.s32 %s17, 2
      %s30 = sadd.s32 1, %s25
      %p31 = scmp.ge.s32.totalorder %s30, 1
      %s32 = scalar_select %p31, 0, %s30
      %s33 = sadd.s32 1, %s24
      %s34 = scalar_select %p31, %s33, %s24
      %p35 = scmp.ge.s32.totalorder %s34, 2
      %s36 = scalar_select %p35, 0, %s34
      %s37 = ssub.s32 %s24, %s36
      %s38 = ssub.s32 %s25, %s32
      %s39 = sor.u32 %s37, %s38
      %p40 = scmp.eq.s32.totalorder %s39, 0
      %s42 = sadd.s32 %s41, 1
      %s43 = scalar_select %p40, %s41, %s42
      %p46 = pneg %p40
      %p47 = scmp.eq.s32.totalorder %s17, 1
      %p48 = por %p46, %p47
      %p49 = scmp.ne.s32.totalorder %s41, %s44
      %p50 = scmp.eq.s32.totalorder %s17, 0
      %p51 = por %p49, %p50
      %p52 = scmp.ne.s32.totalorder %s41, %s44
      %p53 = scmp.eq.s32.totalorder %s22, 1
      %p54 = por %p52, %p53
      %p55 = scmp.ne.s32.totalorder %s44, %s45
      %p56 = scmp.eq.s32.totalorder %s22, 0
      %p57 = por %p55, %p56
      %p58 = scmp.ne.s32.totalorder %s44, %s45
      %p59 = scmp.eq.s32.totalorder %s23, 1
      %p60 = por %p58, %p59
      %p62 = scmp.ne.s32.totalorder %s45, %s61
      %p63 = scmp.eq.s32.totalorder %s23, 0
      %p64 = por %p62, %p63
      %s66 = sadd.s32 %s65, 1
      %p69 = scmp.eq.s32.totalorder %s17, 1
      %p70 = scmp.ne.s32.totalorder %s65, %s67
      %p71 = scmp.eq.s32.totalorder %s17, 0
      %p72 = por %p70, %p71
      %p73 = scmp.ne.s32.totalorder %s65, %s67
      %p74 = scmp.eq.s32.totalorder %s22, 1
      %p75 = por %p73, %p74
      %p76 = scmp.ne.s32.totalorder %s67, %s68
      %p77 = scmp.eq.s32.totalorder %s22, 0
      %p78 = por %p76, %p77
      %p79 = scmp.ne.s32.totalorder %s67, %s68
      %p80 = scmp.eq.s32.totalorder %s23, 1
      %p81 = por %p79, %p80
      %p83 = scmp.ne.s32.totalorder %s68, %s82
      %p84 = scmp.eq.s32.totalorder %s23, 0
      %p85 = por %p83, %p84
      %s87 = sadd.s32 %s86, 1
      %p90 = scmp.eq.s32.totalorder %s17, 1
      %p91 = scmp.ne.s32.totalorder %s86, %s88
      %p92 = scmp.eq.s32.totalorder %s17, 0
      %p93 = por %p91, %p92
      %p94 = scmp.ne.s32.totalorder %s86, %s88
      %p95 = scmp.eq.s32.totalorder %s22, 1
      %p96 = por %p94, %p95
      %p97 = scmp.ne.s32.totalorder %s88, %s89
      %p98 = scmp.eq.s32.totalorder %s22, 0
      %p99 = por %p97, %p98
      %p100 = scmp.ne.s32.totalorder %s88, %s89
      %p101 = scmp.eq.s32.totalorder %s23, 1
      %p102 = por %p100, %p101
      %p104 = scmp.ne.s32.totalorder %s89, %s103
      %p105 = scmp.eq.s32.totalorder %s23, 0
      %p106 = por %p104, %p105
      %s108 = sadd.s32 %s107, 1
      %p111 = scmp.eq.s32.totalorder %s17, 1
      %p112 = scmp.ne.s32.totalorder %s107, %s109
      %p113 = scmp.eq.s32.totalorder %s17, 0
      %p114 = por %p112, %p113
      %p115 = scmp.ne.s32.totalorder %s107, %s109
      %p116 = scmp.eq.s32.totalorder %s22, 1
      %p117 = por %p115, %p116
      %p118 = scmp.ne.s32.totalorder %s109, %s110
      %p119 = scmp.eq.s32.totalorder %s22, 0
      %p120 = por %p118, %p119
      %p121 = scmp.ne.s32.totalorder %s109, %s110
      %p122 = scmp.eq.s32.totalorder %s23, 1
      %p123 = por %p121, %p122
      %p125 = scmp.ne.s32.totalorder %s110, %s124
      %p126 = scmp.eq.s32.totalorder %s23, 0
      %p127 = por %p125, %p126
      %s129 = sadd.s32 %s128, 1
      %p132 = scmp.eq.s32.totalorder %s17, 1
      %p133 = scmp.ne.s32.totalorder %s128, %s130
      %p134 = scmp.eq.s32.totalorder %s17, 0
      %p135 = por %p133, %p134
      %p136 = scmp.ne.s32.totalorder %s128, %s130
      %p137 = scmp.eq.s32.totalorder %s22, 1
      %p138 = por %p136, %p137
      %p139 = scmp.ne.s32.totalorder %s130, %s131
      %p140 = scmp.eq.s32.totalorder %s22, 0
      %p141 = por %p139, %p140
      %p142 = scmp.ne.s32.totalorder %s130, %s131
      %p143 = scmp.eq.s32.totalorder %s23, 1
      %p144 = por %p142, %p143
      %p146 = scmp.ne.s32.totalorder %s131, %s145
      %p147 = scmp.eq.s32.totalorder %s23, 0
      %p148 = por %p146, %p147
      %s149 = ssub.s32 %s24, %s36
      %p150 = scmp.eq.s32.totalorder %s149, 0
      %s152 = sadd.s32 %s151, 1
      %s153 = scalar_select %p150, %s151, %s152
      %p156 = pneg %p150
      %p157 = scmp.eq.s32.totalorder %s17, 1
      %p158 = por %p156, %p157
      %p159 = scmp.ne.s32.totalorder %s151, %s154
      %p160 = scmp.eq.s32.totalorder %s17, 0
      %p161 = por %p159, %p160
      %p162 = scmp.ne.s32.totalorder %s151, %s154
      %p163 = scmp.eq.s32.totalorder %s22, 1
      %p164 = por %p162, %p163
      %p165 = scmp.ne.s32.totalorder %s154, %s155
      %p166 = scmp.eq.s32.totalorder %s22, 0
      %p167 = por %p165, %p166
      %p168 = scmp.ne.s32.totalorder %s154, %s155
      %p169 = scmp.eq.s32.totalorder %s23, 1
      %p170 = por %p168, %p169
      %p172 = scmp.ne.s32.totalorder %s155, %s171
      %p173 = scmp.eq.s32.totalorder %s23, 0
      %p174 = por %p172, %p173
      %p175 = scmp.le.s32.totalorder 1, %s17
      %p176 = scmp.lt.s32.totalorder %s17, 3
      %p177 = pnand %p175, %p176
      %p178 = pneg %p177
      // Predicated region
      $region9: #{tpu_custom_call.1} parent=5 // pred_check
        _
      $region10: #{tpu_custom_call.1} parent=5 // pred_check_branch
        %180 = sbr.rel (%p177) target = $region12
      $region11: #{tpu_custom_call.1} parent=5 // pred_region
        %s181 = ssub.s32 %s17, 1
        // Predicated region
        $region13: #{tpu_custom_call.1} parent=11 // pred_check
          %p182 = pneg %p78
        $region14: #{tpu_custom_call.1} parent=11 // pred_check_branch
          %184 = sbr.rel (%p182) target = $region16
        $region15: #{tpu_custom_call.1} parent=11 // pred_region
          _
        $region16: #{tpu_custom_call.1} parent=11 // pred_fallthru
          _
        // Predicated region
        $region17: #{tpu_custom_call.1} parent=11 // pred_check
          %p185 = pneg %p99
        $region18: #{tpu_custom_call.1} parent=11 // pred_check_branch
          %187 = sbr.rel (%p185) target = $region20
        $region19: #{tpu_custom_call.1} parent=11 // pred_region
          _
        $region20: #{tpu_custom_call.1} parent=11 // pred_fallthru
          _
        // Predicated region
        $region21: #{tpu_custom_call.1} parent=11 // pred_check
          %p188 = pneg %p120
        $region22: #{tpu_custom_call.1} parent=11 // pred_check_branch
          %190 = sbr.rel (%p188) target = $region24
        $region23: #{tpu_custom_call.1} parent=11 // pred_region
          _
        $region24: #{tpu_custom_call.1} parent=11 // pred_fallthru
          _
        // Predicated region
        $region25: #{tpu_custom_call.1} parent=11 // pred_check
          %p191 = pneg %p141
        $region26: #{tpu_custom_call.1} parent=11 // pred_check_branch
          %193 = sbr.rel (%p191) target = $region28
        $region27: #{tpu_custom_call.1} parent=11 // pred_region
          _
        $region28: #{tpu_custom_call.1} parent=11 // pred_fallthru
          _
      $region12: #{tpu_custom_call.1} parent=5 // pred_fallthru
        _
      %p194 = scmp.lt.s32.totalorder %s17, 2
      // Predicated region
      $region29: #{tpu_custom_call.1} parent=5 // pred_check
        %p195 = pneg %p194
      $region30: #{tpu_custom_call.1} parent=5 // pred_check_branch
        %197 = sbr.rel (%p195) target = $region32
      $region31: #{tpu_custom_call.1} parent=5 // pred_region
        // Predicated region
        $region33: #{tpu_custom_call.1} parent=31 // pred_check
          %p198 = pneg %p51
        $region34: #{tpu_custom_call.1} parent=31 // pred_check_branch
          %200 = sbr.rel (%p198) target = $region36
        $region35: #{tpu_custom_call.1} parent=31 // pred_region
          %s201 = sand.u32 %s41, 1
          %s202 = scalar_lea.sflag [#allocation4], %s201
          %s203 = sand.u32 %s41, 1
          %s204 = smul.addr %s203, 128
          %s205 = scalar_lea.vmem [#allocation3], %s204
          %s206 = smul.u32 2, %s25
          %s208 = ssub.s32 2048, 2048
          %209 = vsyncadd %s202, %s208
          %s210 = smul.addr %s24, 16
          %s211 = sadd.s32 %s206, %s210
          %s212 = smul.addr %s211, 128
          %s213 = scalar_lea.hbm %s0, %s212
          %s214 = sshll.u32 %s205, 4
          %s215 = int_to_ptr.vmem [resolvable:$true] %s214
          %220 = dma.hbm_to_vmem [thread:$0]  %s213, 2048, %s215, %s202, 256, 256, 16
        $region36: #{tpu_custom_call.1} parent=31 // pred_fallthru
          _
      $region32: #{tpu_custom_call.1} parent=5 // pred_fallthru
        _
      %p221 = scmp.le.s32.totalorder 1, %s17
      %p222 = scmp.lt.s32.totalorder %s17, 3
      %p223 = pnand %p221, %p222
      %p224 = pneg %p223
      // Predicated region
      $region37: #{tpu_custom_call.1} parent=5 // pred_check
        _
      $region38: #{tpu_custom_call.1} parent=5 // pred_check_branch
        %226 = sbr.rel (%p223) target = $region40
      $region39: #{tpu_custom_call.1} parent=5 // pred_region
        %s227 = ssub.s32 %s17, 1
        %s228 = sand.u32 %s44, 1
        %s229 = scalar_lea.sflag [#allocation4], %s228
        %s230 = sand.u32 %s44, 1
        %s231 = smul.addr %s230, 128
        %s232 = scalar_lea.vmem [#allocation3], %s231
        // Predicated region
        $region41: #{tpu_custom_call.1} parent=39 // pred_check
          %p233 = pneg %p57
        $region42: #{tpu_custom_call.1} parent=39 // pred_check_branch
          %235 = sbr.rel (%p233) target = $region44
        $region43: #{tpu_custom_call.1} parent=39 // pred_region
          %236 = dma.done %s229, 2048
        $region44: #{tpu_custom_call.1} parent=39 // pred_fallthru
          _
        %s237 = sand.u32 %s44, 1
        %s238 = scalar_lea.sflag [#allocation4], %s237
        %s239 = sand.u32 %s44, 1
        %s240 = smul.addr %s239, 128
        %s241 = scalar_lea.vmem [#allocation3], %s240
        %p242 = pneg %p57
        %p243 = pneg %p54
        %p244 = pneg %p78
        %p245 = pneg %p75
        %p246 = pneg %p99
        %p247 = pneg %p96
        %p248 = pneg %p120
        %p249 = pneg %p117
        %p250 = pneg %p141
        %p251 = pneg %p138
        %p252 = pneg %p167
        %p253 = pneg %p164
        %s254 = sand.u32 %s154, 1
        %s255 = scalar_lea.sflag [#allocation5], %s254
        %s256 = sand.u32 %s154, 1
        %s257 = scalar_lea.vmem [#allocation6], %s256
        %s258 = smul.u32 2, %s27
        %p259 = scmp.eq.s32.totalorder %s27, 0
        // Predicated region
        $region45: #{tpu_custom_call.1} parent=39 // pred_check
          %p260 = pneg %p259
        $region46: #{tpu_custom_call.1} parent=39 // pred_check_branch
          %262 = sbr.rel (%p260) target = $region48
        $region47: #{tpu_custom_call.1} parent=39 // pred_region
          %263 = vst [vmem:[#allocation2] sm:$0xff] 0.0
          %264 = vst [vmem:[#allocation2 + $0x8] sm:$0xff] 0.0
          %265 = vst [vmem:[#allocation2 + $0x10] sm:$0xff] 0.0
          %266 = vst [vmem:[#allocation2 + $0x18] sm:$0xff] 0.0
          %267 = vst [vmem:[#allocation2 + $0x20] sm:$0xff] 0.0
          %268 = vst [vmem:[#allocation2 + $0x28] sm:$0xff] 0.0
          %269 = vst [vmem:[#allocation2 + $0x30] sm:$0xff] 0.0
          %270 = vst [vmem:[#allocation2 + $0x38] sm:$0xff] 0.0
        $region48: #{tpu_custom_call.1} parent=39 // pred_fallthru
          _
        %v271 = vld [vmem:[#allocation2] sm:$0xff]
        %v272 = vld [vmem:[#allocation2 + $0x8] sm:$0xff]
        %v273 = vld [vmem:[#allocation2 + $0x10] sm:$0xff]
        %v274 = vld [vmem:[#allocation2 + $0x18] sm:$0xff]
        %v275 = vld [vmem:[#allocation2 + $0x20] sm:$0xff]
        %v276 = vld [vmem:[#allocation2 + $0x28] sm:$0xff]
        %v277 = vld [vmem:[#allocation2 + $0x30] sm:$0xff]
        %v278 = vld [vmem:[#allocation2 + $0x38] sm:$0xff]
        %v279 = vld [vmem:[%s232] sm:$0xff]
        %v280 = vld [vmem:[%s232 + $0x10] sm:$0xff]
        %v281 = vld [vmem:[%s232 + $0x20] sm:$0xff]
        %v282 = vld [vmem:[%s232 + $0x30] sm:$0xff]
        %v283 = vld [vmem:[%s232 + $0x40] sm:$0xff]
        %v284 = vld [vmem:[%s232 + $0x50] sm:$0xff]
        %v285 = vld [vmem:[%s232 + $0x60] sm:$0xff]
        %v286 = vld [vmem:[%s232 + $0x70] sm:$0xff]
        %v287 = vadd.f32 %v271, %v279
        %v288 = vadd.f32 %v272, %v280
        %v289 = vadd.f32 %v273, %v281
        %v290 = vadd.f32 %v274, %v282
        %v291 = vadd.f32 %v275, %v283
        %v292 = vadd.f32 %v276, %v284
        %v293 = vadd.f32 %v277, %v285
        %v294 = vadd.f32 %v278, %v286
        %s295 = scalar_lea.vmem %s232, 8 [#allocation3]
        %v296 = vld [vmem:[%s295] sm:$0xff]
        %v297 = vld [vmem:[%s295 + $0x10] sm:$0xff]
        %v298 = vld [vmem:[%s295 + $0x20] sm:$0xff]
        %v299 = vld [vmem:[%s295 + $0x30] sm:$0xff]
        %v300 = vld [vmem:[%s295 + $0x40] sm:$0xff]
        %v301 = vld [vmem:[%s295 + $0x50] sm:$0xff]
        %v302 = vld [vmem:[%s295 + $0x60] sm:$0xff]
        %v303 = vld [vmem:[%s295 + $0x70] sm:$0xff]
        %v304 = vadd.f32 %v287, %v296
        %v305 = vadd.f32 %v288, %v297
        %v306 = vadd.f32 %v289, %v298
        %v307 = vadd.f32 %v290, %v299
        %v308 = vadd.f32 %v291, %v300
        %v309 = vadd.f32 %v292, %v301
        %v310 = vadd.f32 %v293, %v302
        %v311 = vadd.f32 %v294, %v303
        %312 = vst [vmem:[#allocation2] sm:$0xff] %v304
        %313 = vst [vmem:[#allocation2 + $0x8] sm:$0xff] %v305
        %314 = vst [vmem:[#allocation2 + $0x10] sm:$0xff] %v306
        %315 = vst [vmem:[#allocation2 + $0x18] sm:$0xff] %v307
        %316 = vst [vmem:[#allocation2 + $0x20] sm:$0xff] %v308
        %317 = vst [vmem:[#allocation2 + $0x28] sm:$0xff] %v309
        %318 = vst [vmem:[#allocation2 + $0x30] sm:$0xff] %v310
        %319 = vst [vmem:[#allocation2 + $0x38] sm:$0xff] %v311
        // Predicated region
        $region49: #{tpu_custom_call.1} parent=39 // pred_check
          %p320 = pneg %p259
        $region50: #{tpu_custom_call.1} parent=39 // pred_check_branch
          %322 = sbr.rel (%p320) target = $region52
        $region51: #{tpu_custom_call.1} parent=39 // pred_region
          %v323 = vld [vmem:[#allocation2] sm:$0xff]
          %v324 = vld [vmem:[#allocation2 + $0x8] sm:$0xff]
          %v325 = vld [vmem:[#allocation2 + $0x10] sm:$0xff]
          %v326 = vld [vmem:[#allocation2 + $0x18] sm:$0xff]
          %v327 = vld [vmem:[#allocation2 + $0x20] sm:$0xff]
          %v328 = vld [vmem:[#allocation2 + $0x28] sm:$0xff]
          %v329 = vld [vmem:[#allocation2 + $0x30] sm:$0xff]
          %v330 = vld [vmem:[#allocation2 + $0x38] sm:$0xff]
          %331 = vadd.xlane.f32.xlu0 %v323
          %v332 = vpop.xlane.xlu0 %331
          %333 = vadd.xlane.f32.xlu0 %v324
          %v334 = vpop.xlane.xlu0 %333
          %335 = vadd.xlane.f32.xlu0 %v325
          %v336 = vpop.xlane.xlu0 %335
          %337 = vadd.xlane.f32.xlu0 %v326
          %v338 = vpop.xlane.xlu0 %337
          %339 = vadd.xlane.f32.xlu0 %v327
          %v340 = vpop.xlane.xlu0 %339
          %341 = vadd.xlane.f32.xlu0 %v328
          %v342 = vpop.xlane.xlu0 %341
          %343 = vadd.xlane.f32.xlu0 %v329
          %v344 = vpop.xlane.xlu0 %343
          %345 = vadd.xlane.f32.xlu0 %v330
          %v346 = vpop.xlane.xlu0 %345
          %v347 = vmul.f32 %v332, 0.00390625
          %v348 = vmul.f32 %v334, 0.00390625
          %v349 = vmul.f32 %v336, 0.00390625
          %v350 = vmul.f32 %v338, 0.00390625
          %v351 = vmul.f32 %v340, 0.00390625
          %v352 = vmul.f32 %v342, 0.00390625
          %v353 = vmul.f32 %v344, 0.00390625
          %v354 = vmul.f32 %v346, 0.00390625
          %v355 = vld [vmem:[%s1] sm:$0xff]
          %v356 = vld [vmem:[%s1 + $0x8] sm:$0xff]
          %v357 = vld [vmem:[%s1 + $0x10] sm:$0xff]
          %v358 = vld [vmem:[%s1 + $0x18] sm:$0xff]
          %v359 = vld [vmem:[%s1 + $0x20] sm:$0xff]
          %v360 = vld [vmem:[%s1 + $0x28] sm:$0xff]
          %v361 = vld [vmem:[%s1 + $0x30] sm:$0xff]
          %v362 = vld [vmem:[%s1 + $0x38] sm:$0xff]
          %v363 = vld [vmem:[%s2] sm:$0x1]
          %v372 = vlaneseq
          %v373 = vand.u32 %v372, 127
          %v374 = vlaneseq
          %v375 = vshrl.u32 %v374, 7
          %v376 = vsub.s32 %v373, %v375
          %v377 = vrot.slane %v347, %v376
          %v378 = vadd.s32 %v373, 4294967288
          %v379 = vlaneseq
          %v380 = vshrl.u32 %v379, 7
          %v381 = vsub.s32 %v378, %v380
          %v382 = vrot.slane %v348, %v381
          %vm383 = vcmask 130112
          %v384 = vsel %vm383, %v382, %v377
          %v385 = vadd.s32 %v373, 4294967280
          %v386 = vlaneseq
          %v387 = vshrl.u32 %v386, 7
          %v388 = vsub.s32 %v385, %v387
          %v389 = vrot.slane %v349, %v388
          %vm390 = vcmask 195712
          %v391 = vsel %vm390, %v389, %v384
          %v392 = vadd.s32 %v373, 4294967272
          %v393 = vlaneseq
          %v394 = vshrl.u32 %v393, 7
          %v395 = vsub.s32 %v392, %v394
          %v396 = vrot.slane %v350, %v395
          %vm397 = vcmask 261312
          %v398 = vsel %vm397, %v396, %v391
          %v399 = vadd.s32 %v373, 4294967264
          %v400 = vlaneseq
          %v401 = vshrl.u32 %v400, 7
          %v402 = vsub.s32 %v399, %v401
          %v403 = vrot.slane %v351, %v402
          %vm404 = vcmask 326912
          %v405 = vsel %vm404, %v403, %v398
          %v406 = vadd.s32 %v373, 4294967256
          %v407 = vlaneseq
          %v408 = vshrl.u32 %v407, 7
          %v409 = vsub.s32 %v406, %v408
          %v410 = vrot.slane %v352, %v409
          %vm411 = vcmask 392512
          %v412 = vsel %vm411, %v410, %v405
          %v413 = vadd.s32 %v373, 4294967248
          %v414 = vlaneseq
          %v415 = vshrl.u32 %v414, 7
          %v416 = vsub.s32 %v413, %v415
          %v417 = vrot.slane %v353, %v416
          %vm418 = vcmask 458112
          %v419 = vsel %vm418, %v417, %v412
          %v420 = vadd.s32 %v373, 4294967240
          %v421 = vlaneseq
          %v422 = vshrl.u32 %v421, 7
          %v423 = vsub.s32 %v420, %v422
          %v424 = vrot.slane %v354, %v423
          %vm425 = vcmask 523712
          %v426 = vsel %vm425, %v424, %v419
          %vm427 = vcmask 523264
          %v428 = vsel %vm427, %v426, 0
          %430 = vmatprep.subr.mxu0 0.0
          %431 = vmatpush1.msra.mxu0 %v355
          %432 = vmatprep.subr.mxu0 0.0
          %433 = vmatpush1.msra.mxu0 %v356
          %434 = vmatprep.subr.mxu0 0.0
          %435 = vmatpush1.msra.mxu0 %v357
          %436 = vmatprep.subr.mxu0 0.0
          %437 = vmatpush1.msra.mxu0 %v358
          %438 = vmatprep.subr.mxu0 0.0
          %439 = vmatpush1.msra.mxu0 %v359
          %440 = vmatprep.subr.mxu0 0.0
          %441 = vmatpush1.msra.mxu0 %v360
          %442 = vmatprep.subr.mxu0 0.0
          %443 = vmatpush1.msra.mxu0 %v361
          %444 = vmatprep.subr.mxu0 0.0
          %445 = vmatpush1.msra.mxu0 %v362
          %446 = vmatprep.subr.mxu0 0.0
          %447 = vmatpush1.msra.mxu0 0.0
          %448 = vmatprep.subr.mxu0 0.0
          %449 = vmatpush1.msra.mxu0 0.0
          %450 = vmatprep.subr.mxu0 0.0
          %451 = vmatpush1.msra.mxu0 0.0
          %452 = vmatprep.subr.mxu0 0.0
          %453 = vmatpush1.msra.mxu0 0.0
          %454 = vmatprep.subr.mxu0 0.0
          %455 = vmatpush1.msra.mxu0 0.0
          %456 = vmatprep.subr.mxu0 0.0
          %457 = vmatpush1.msra.mxu0 0.0
          %458 = vmatprep.subr.mxu0 0.0
          %459 = vmatpush1.msra.mxu0 0.0
          %460 = vmatprep.subr.mxu0 0.0
          %461 = vmatpush1.msra.mxu0 0.0
          %462 = vmatprep.subr.mxu0 0.0
          %463 = vmatpush1.msra.mxu0 0.0
          %464 = vmatprep.subr.mxu0 0.0
          %465 = vmatpush1.msra.mxu0 0.0
          %466 = vmatprep.subr.mxu0 0.0
          %467 = vmatpush1.msra.mxu0 0.0
          %468 = vmatprep.subr.mxu0 0.0
          %469 = vmatpush1.msra.mxu0 0.0
          %470 = vmatprep.subr.mxu0 0.0
          %471 = vmatpush1.msra.mxu0 0.0
          %472 = vmatprep.subr.mxu0 0.0
          %473 = vmatpush1.msra.mxu0 0.0
          %474 = vmatprep.subr.mxu0 0.0
          %475 = vmatpush1.msra.mxu0 0.0
          %476 = vmatprep.subr.mxu0 0.0
          %477 = vmatpush1.msra.mxu0 0.0
          %478 = vmatprep.subr.mxu0 0.0
          %479 = vmatpush1.msra.mxu0 0.0
          %480 = vmatprep.subr.mxu0 0.0
          %481 = vmatpush1.msra.mxu0 0.0
          %482 = vmatprep.subr.mxu0 0.0
          %483 = vmatpush1.msra.mxu0 0.0
          %484 = vmatprep.subr.mxu0 0.0
          %485 = vmatpush1.msra.mxu0 0.0
          %486 = vmatprep.subr.mxu0 0.0
          %487 = vmatpush1.msra.mxu0 0.0
          %488 = vmatprep.subr.mxu0 0.0
          %489 = vmatpush1.msra.mxu0 0.0
          %490 = vmatprep.subr.mxu0 0.0
          %491 = vmatpush1.msra.mxu0 0.0
          %492 = vmatprep.subr.mxu0 0.0
          %493 = vmatpush1.msra.mxu0 0.0
          %494 = vmatprep.mubr.f32.mxu0 0.0
          %495 = vmatmul.mubr.f32.gmra.mrb[0].mxu0 %v428
          %v496 = vpop.f32.mrb[0].mxu0
          %v497 = vadd.f32 %v363, %v496
          %v498 = vpop.f32.mrb[0].mxu0
          %499 = vdwg.mxu0
          %v500 = vmax.f32 %v497, 0.0
          %v501 = vld [vmem:[%s3] sm:$0xf]
          %v502 = vld [vmem:[%s4] sm:$0x1]
          %vm503 = vcmask 31744
          %v505 = vsel %vm503, %v500, 0
          %vm507 = vcmask 1043456
          %v509 = vsel %vm507, %v501, 0
          %511 = vmatprep.subr.mxu0 0.0
          %512 = vmatpush1.msra.mxu0 %v509
          %513 = vmatprep.subr.mxu0 0.0
          %514 = vmatpush1.msra.mxu0 0.0
          %515 = vmatprep.subr.mxu0 0.0
          %516 = vmatpush1.msra.mxu0 0.0
          %517 = vmatprep.subr.mxu0 0.0
          %518 = vmatpush1.msra.mxu0 0.0
          %519 = vmatprep.subr.mxu0 0.0
          %520 = vmatpush1.msra.mxu0 0.0
          %521 = vmatprep.subr.mxu0 0.0
          %522 = vmatpush1.msra.mxu0 0.0
          %523 = vmatprep.subr.mxu0 0.0
          %524 = vmatpush1.msra.mxu0 0.0
          %525 = vmatprep.subr.mxu0 0.0
          %526 = vmatpush1.msra.mxu0 0.0
          %527 = vmatprep.subr.mxu0 0.0
          %528 = vmatpush1.msra.mxu0 0.0
          %529 = vmatprep.subr.mxu0 0.0
          %530 = vmatpush1.msra.mxu0 0.0
          %531 = vmatprep.subr.mxu0 0.0
          %532 = vmatpush1.msra.mxu0 0.0
          %533 = vmatprep.subr.mxu0 0.0
          %534 = vmatpush1.msra.mxu0 0.0
          %535 = vmatprep.subr.mxu0 0.0
          %536 = vmatpush1.msra.mxu0 0.0
          %537 = vmatprep.subr.mxu0 0.0
          %538 = vmatpush1.msra.mxu0 0.0
          %539 = vmatprep.subr.mxu0 0.0
          %540 = vmatpush1.msra.mxu0 0.0
          %541 = vmatprep.subr.mxu0 0.0
          %542 = vmatpush1.msra.mxu0 0.0
          %543 = vmatprep.subr.mxu0 0.0
          %544 = vmatpush1.msra.mxu0 0.0
          %545 = vmatprep.subr.mxu0 0.0
          %546 = vmatpush1.msra.mxu0 0.0
          %547 = vmatprep.subr.mxu0 0.0
          %548 = vmatpush1.msra.mxu0 0.0
          %549 = vmatprep.subr.mxu0 0.0
          %550 = vmatpush1.msra.mxu0 0.0
          %551 = vmatprep.subr.mxu0 0.0
          %552 = vmatpush1.msra.mxu0 0.0
          %553 = vmatprep.subr.mxu0 0.0
          %554 = vmatpush1.msra.mxu0 0.0
          %555 = vmatprep.subr.mxu0 0.0
          %556 = vmatpush1.msra.mxu0 0.0
          %557 = vmatprep.subr.mxu0 0.0
          %558 = vmatpush1.msra.mxu0 0.0
          %559 = vmatprep.subr.mxu0 0.0
          %560 = vmatpush1.msra.mxu0 0.0
          %561 = vmatprep.subr.mxu0 0.0
          %562 = vmatpush1.msra.mxu0 0.0
          %563 = vmatprep.subr.mxu0 0.0
          %564 = vmatpush1.msra.mxu0 0.0
          %565 = vmatprep.subr.mxu0 0.0
          %566 = vmatpush1.msra.mxu0 0.0
          %567 = vmatprep.subr.mxu0 0.0
          %568 = vmatpush1.msra.mxu0 0.0
          %569 = vmatprep.subr.mxu0 0.0
          %570 = vmatpush1.msra.mxu0 0.0
          %571 = vmatprep.subr.mxu0 0.0
          %572 = vmatpush1.msra.mxu0 0.0
          %573 = vmatprep.subr.mxu0 0.0
          %574 = vmatpush1.msra.mxu0 0.0
          %575 = vmatprep.mubr.f32.mxu0 0.0
          %576 = vmatmul.mubr.f32.gmra.mrb[0].mxu0 %v505
          %v577 = vpop.f32.mrb[0].mxu0
          %v578 = vadd.f32 %v502, %v577
          %v579 = vpop.f32.mrb[0].mxu0
          %580 = vdwg.mxu0
          %v581 = vxor.u32 %v578, 2147483648
          %v582 = vmul.f32 %v581, 1.442695
          %v583 = vpow.pop %v582
          %v584 = vadd.f32 %v583, 1.0
          %v585 = vrcp.pop %v584
          %v586 = vmul.f32 1.0, %v585
          %vm587 = vcmask 516096
          %588 = vst.msk [vmem:[%s257] sm:$0x1] %vm587, %v586
        $region52: #{tpu_custom_call.1} parent=39 // pred_fallthru
          _
        %s589 = sand.u32 %s154, 1
        %s590 = scalar_lea.sflag [#allocation5], %s589
        %s591 = sand.u32 %s154, 1
        %s592 = scalar_lea.vmem [#allocation6], %s591
        // Predicated region
        $region53: #{tpu_custom_call.1} parent=39 // pred_check
          %p593 = pneg %p164
        $region54: #{tpu_custom_call.1} parent=39 // pred_check_branch
          %595 = sbr.rel (%p593) target = $region56
        $region55: #{tpu_custom_call.1} parent=39 // pred_region
          %s597 = ssub.s32 16, 16
          %598 = vsyncadd %s590, %s597
          %s599 = smul.addr %s26, 16
          %s600 = scalar_lea.hbm %s5, %s599
          %s602 = sshll.u32 %s592, 4
          %s603 = int_to_ptr.vmem [resolvable:$true] %s602
          %605 = dma.vmem_to_hbm [thread:$0]  %s603, 16, %s600, %s590
        $region56: #{tpu_custom_call.1} parent=39 // pred_fallthru
          _
      $region40: #{tpu_custom_call.1} parent=5 // pred_fallthru
        _
      %p606 = scmp.le.s32.totalorder 2, %s17
      // Predicated region
      $region57: #{tpu_custom_call.1} parent=5 // pred_check
        %p607 = pneg %p606
      $region58: #{tpu_custom_call.1} parent=5 // pred_check_branch
        %609 = sbr.rel (%p607) target = $region60
      $region59: #{tpu_custom_call.1} parent=5 // pred_region
        %s610 = ssub.s32 %s17, 2
        // Predicated region
        $region61: #{tpu_custom_call.1} parent=59 // pred_check
          %p611 = pneg %p170
        $region62: #{tpu_custom_call.1} parent=59 // pred_check_branch
          %613 = sbr.rel (%p611) target = $region64
        $region63: #{tpu_custom_call.1} parent=59 // pred_region
          %s614 = sand.u32 %s155, 1
          %s615 = scalar_lea.sflag [#allocation5], %s614
          %s616 = sand.u32 %s155, 1
          %s617 = scalar_lea.vmem [#allocation6], %s616
          %618 = dma.done %s615, 16
        $region64: #{tpu_custom_call.1} parent=59 // pred_fallthru
          _
      $region60: #{tpu_custom_call.1} parent=5 // pred_fallthru
        _
    $region6: #{tpu_custom_call.1} parent=1 // loop_footer
      %s21 = sadd.s32 1, %s17
    $region7: #{tpu_custom_call.1} parent=1 // loop_footer_branch
      %16 = sbr.rel target = $region3
    $region8: #{tpu_custom_call.1} parent=1 // loop_exit
      _
    %619 = vsyncpa [#allocation4], 1
    %s620 = scalar_lea.sflag [#allocation4], 1
    %621 = vsyncpa %s620, 1
    %622 = vsyncpa [#allocation5], 1
    %s623 = scalar_lea.sflag [#allocation5], 1
    %624 = vsyncpa %s623, 1

</llo_original>
